<compile_context>
chip_gen: v7x
topology: tpu7x:2x2x1
jax: 0.10.0
libtpu: 0.0.40
codegen_flags: <defaults>
</compile_context>

<pallas_src>
import math

import jax
import jax.numpy as jnp
from jax.experimental import pallas as pl
from jax.experimental.pallas import tpu as pltpu


def _max_kernel(a_ref, b_ref, o_ref):
    # Element-wise VPU op; promote to the output dtype inside the kernel so the
    # wrapper never does a separate full-array convert pass through HBM.
    out_dtype = o_ref.dtype
    o_ref[...] = jnp.maximum(a_ref[...].astype(out_dtype),
                             b_ref[...].astype(out_dtype))


def _choose_factorization(total: int):
    """Pick (rows, cols, pad) for a lane-dense 2-D view of `total` elements."""
    # Preferred: cols a big multiple of 128 AND rows a multiple of 8
    # (full (8,128) vreg tiles, unmasked sublane stores).
    for c in (1024, 512, 256, 128):
        if total % c == 0:
            r = total // c
            if r >= 8 and r % 8 == 0:
                return r, c, 0
    # Next: any exact factorization with a 128-multiple of lanes.
    for c in (1024, 512, 256, 128):
        if total % c == 0:
            return total // c, c, 0
    # Awkward size: pad the flat length up to a multiple of 1024 (8x128) so the
    # kernel still streams MiB-scale contiguous blocks; tail is sliced off.
    c = 1024
    padded = pl.cdiv(total, c) * c
    return padded // c, c, padded - total


def _choose_tm(rows: int, cols: int, itemsize: int, target_bytes: int):
    """Block rows sized by a byte budget, sublane-legal, >=2 grid steps when possible."""
    if rows <= 8:
        return rows  # full-dim block (legal regardless of the (8,128) rule)
    tm = target_bytes // (cols * itemsize)
    tm = max((tm // 32) * 32, 8)
    # Keep at least 2 grid steps on the parallel axis so both v7x TensorCores
    # (and their per-TC HBM bandwidth) get work. Harmless on v5e/v6e.
    if rows >= 16:
        half = max(8, (rows // 2 // 8) * 8)
        tm = min(tm, half)
    tm = min(tm, rows)
    if tm != rows and tm % 8 != 0:
        tm = max(8, (tm // 8) * 8)
    return tm


def max_layer(a: jax.Array, b: jax.Array, *, target_block_bytes: int = 2 * 1024 * 1024) -> jax.Array:
    """Pallas equivalent of MaxLayer.forward: element-wise max(a, b)."""
    assert a.shape == b.shape, "MaxLayer kernel expects same-shape inputs"
    # TODO(synk): torch.max broadcasting between differently-shaped a/b is not supported here.
    orig_shape = a.shape
    out_dtype = jnp.result_type(a.dtype, b.dtype)

    total = int(math.prod(orig_shape)) if orig_shape else 1
    if total == 0:
        return jnp.zeros(orig_shape, dtype=out_dtype)

    rows, cols, pad = _choose_factorization(total)

    a_flat = a.reshape(total)
    b_flat = b.reshape(total)
    if pad:
        a_flat = jnp.pad(a_flat, (0, pad))
        b_flat = jnp.pad(b_flat, (0, pad))
    a2 = a_flat.reshape(rows, cols)
    b2 = b_flat.reshape(rows, cols)

    out_itemsize = jnp.dtype(out_dtype).itemsize
    tm = _choose_tm(rows, cols, out_itemsize, target_block_bytes)

    grid = (pl.cdiv(rows, tm),)
    spec = pl.BlockSpec((tm, cols), lambda i: (i, 0))

    # Double-buffered footprint for 2 inputs + 1 output (actual dtypes), with
    # 2x headroom; explicit raise over v5e's 16 MiB scoped default, capped at
    # 48 MiB so we never claim v7x's entire 64 MiB physical VMEM.
    block_bytes_all = tm * cols * (
        jnp.dtype(a.dtype).itemsize + jnp.dtype(b.dtype).itemsize + out_itemsize
    )
    footprint = 2 * block_bytes_all
    vmem_limit = int(min(48 * 1024 * 1024, max(32 * 1024 * 1024, 2 * footprint)))

    cost = pl.CostEstimate(
        flops=total,
        transcendentals=0,
        bytes_accessed=total * (jnp.dtype(a.dtype).itemsize
                                + jnp.dtype(b.dtype).itemsize
                                + out_itemsize),
    )

    out2 = pl.pallas_call(
        _max_kernel,
        out_shape=jax.ShapeDtypeStruct((rows, cols), out_dtype),
        grid=grid,
        in_specs=[spec, spec],
        out_specs=spec,
        compiler_params=pltpu.CompilerParams(
            dimension_semantics=("parallel",),
            vmem_limit_bytes=vmem_limit,
        ),
        cost_estimate=cost,
    )(a2, b2)

    out_flat = out2.reshape(rows * cols)
    if pad:
        out_flat = out_flat[:total]
    return out_flat.reshape(orig_shape)


if __name__ == "__main__":
    key = jax.random.PRNGKey(0)
    ka, kb, kc, kd = jax.random.split(key, 4)

    # Small NCHW-style inputs consistent with the module's forward(a, b).
    a = jax.random.normal(ka, (2, 4, 16, 16), dtype=jnp.float32)
    b = jax.random.normal(kb, (2, 4, 16, 16), dtype=jnp.float32)

    out = max_layer(a, b)
    out = jax.block_until_ready(out)
    ref = jnp.maximum(a, b)
    assert out.shape == a.shape, out.shape
    assert out.dtype == ref.dtype, out.dtype
    assert jnp.array_equal(out, ref), "mismatch vs reference element-wise max"

    # Exercise the padded (non-multiple-of-128) path and in-kernel mixed-dtype
    # promotion (bf16 + f32 -> f32), matching jnp/torch promotion semantics.
    a_odd = jax.random.normal(kc, (3, 5, 7), dtype=jnp.bfloat16)
    b_odd = jax.random.normal(kd, (3, 5, 7), dtype=jnp.float32)
    out_odd = jax.block_until_ready(max_layer(a_odd, b_odd))
    ref_odd = jnp.maximum(a_odd, b_odd)
    assert out_odd.shape == ref_odd.shape
    assert out_odd.dtype == ref_odd.dtype
    assert jnp.array_equal(out_odd, ref_odd), "mismatch on padded/mixed-dtype path"

    print("KERNEL_OK")
</pallas_src>

<mosaic_0001>
module attributes {stable_mosaic.version = 11 : i64} {
  func.func @_max_kernel(%arg0: i32, %arg1: memref<8x256xf32, #tpu.memory_space<vmem>>, %arg2: memref<8x256xf32, #tpu.memory_space<vmem>>, %arg3: memref<8x256xf32, #tpu.memory_space<vmem>>) attributes {dimension_semantics = [#tpu.dimension_semantics<parallel>], iteration_bounds = array<i64: 1>, scalar_prefetch = 0 : i64, scratch_operands = 0 : i64, tpu.core_type = #tpu.core_type<tc>, window_params = [{transform_indices = @transform_0, window_bounds = array<i64: 8, 256>}, {transform_indices = @transform_1, window_bounds = array<i64: 8, 256>}, {transform_indices = @transform_2, window_bounds = array<i64: 8, 256>}]} {
    %c0 = arith.constant 0 : index
    %c0_0 = arith.constant 0 : index
    %0 = vector.load %arg1[%c0, %c0_0] : memref<8x256xf32, #tpu.memory_space<vmem>>, vector<8x256xf32>
    %c0_1 = arith.constant 0 : index
    %c0_2 = arith.constant 0 : index
    %1 = vector.load %arg2[%c0_1, %c0_2] : memref<8x256xf32, #tpu.memory_space<vmem>>, vector<8x256xf32>
    %2 = arith.maximumf %0, %1 : vector<8x256xf32>
    %c0_3 = arith.constant 0 : index
    %c0_4 = arith.constant 0 : index
    %3 = vector.load %arg3[%c0_3, %c0_4] : memref<8x256xf32, #tpu.memory_space<vmem>>, vector<8x256xf32>
    tpu.vector_store %arg3[%c0_3, %c0_4], %2 {strides = array<i32>} : memref<8x256xf32, #tpu.memory_space<vmem>>, vector<8x256xf32>,
    return
  }
  func.func @transform_0(%arg0: i32) -> (i32, i32) {
    %c0_i32 = arith.constant 0 : i32
    %c0_i32_0 = arith.constant 0 : i32
    return %arg0, %c0_i32 : i32, i32
  }
  func.func @transform_1(%arg0: i32) -> (i32, i32) {
    %c0_i32 = arith.constant 0 : i32
    %c0_i32_0 = arith.constant 0 : i32
    return %arg0, %c0_i32 : i32, i32
  }
  func.func @transform_2(%arg0: i32) -> (i32, i32) {
    %c0_i32 = arith.constant 0 : i32
    %c0_i32_0 = arith.constant 0 : i32
    return %arg0, %c0_i32 : i32, i32
  }
}

</mosaic_0001>

<llo_original>
// kernel: tpu_custom_call.1
$region0: #{tpu_custom_call.1}
  #allocation0 [shape = 'u32[]', space=smem, size = 0x4, offset = 0x4, fixed_abs, tag = 'smem constant byte address 0x4 - core index']
  #allocation1 [shape = 'u32[144,128]{1,0:T(1,128)}', space=vmem, size = 0x12000, scoped, tag = 'internal scratch']
  %s0 = inlined_call_operand.hbm [shape: f32[8,256], index: 0, kind: input, shape index: {}]
  %s1 = inlined_call_operand.hbm [shape: f32[8,256], index: 1, kind: input, shape index: {}]
  %s2 = inlined_call_operand.hbm [shape: f32[8,256], index: 2, kind: output, shape index: {}]
  %s3 = sld [smem:[#allocation0]]
  $region26: #{tpu_custom_call.1} parent=0
    _
  %s5 = ssub.s32 1, %s3
  %s6 = scalar_select 0, %s5, %s3
  $region1: #{tpu_custom_call.1} parent=0
    #allocation2 [shape = 'u8[8192]{0}', space=vmem, size = 0x2000, scoped, tag = 'input window, operand 0, single buffered']
    #allocation3 [shape = 's32[1]{0}', space=sflag, size = 0x4, scoped, tag = 'scoped memory for tpu_custom_call.1']
    #allocation4 [shape = 's32[1]{0}', space=sflag, size = 0x4, scoped, tag = 'scoped memory for tpu_custom_call.1']
    #allocation5 [shape = 'u8[8192]{0}', space=vmem, size = 0x2000, scoped, tag = 'input window, operand 1, single buffered']
    #allocation6 [shape = 's32[1]{0}', space=sflag, size = 0x4, scoped, tag = 'scoped memory for tpu_custom_call.1']
    #allocation7 [shape = 'u8[8192]{0}', space=vmem, size = 0x2000, scoped, tag = 'output window, operand 0, single buffered']
    %7 = vsyncpa [#allocation3], 0
    %8 = vsyncpa [#allocation6], 0
    %9 = vsyncpa [#allocation4], 0
    // Predicated region
    $region2: #{tpu_custom_call.1} parent=1 // pred_check
      _
    $region3: #{tpu_custom_call.1} parent=1 // pred_check_branch
      %11 = sbr.rel (0) target = $region5
    $region4: #{tpu_custom_call.1} parent=1 // pred_region
      %s13 = ssub.s32 256, 256
      %14 = vsyncadd [#allocation3], %s13
      %s16 = sshll.u32 [#allocation2], 4
      %s17 = int_to_ptr.vmem [resolvable:$true] %s16
      %19 = dma.hbm_to_vmem [thread:$0]  %s0, 256, %s17, [#allocation3]
    $region5: #{tpu_custom_call.1} parent=1 // pred_fallthru
      _
    // Predicated region
    $region6: #{tpu_custom_call.1} parent=1 // pred_check
      _
    $region7: #{tpu_custom_call.1} parent=1 // pred_check_branch
      %21 = sbr.rel (0) target = $region9
    $region8: #{tpu_custom_call.1} parent=1 // pred_region
      %s23 = ssub.s32 256, 256
      %24 = vsyncadd [#allocation6], %s23
      %s26 = sshll.u32 [#allocation5], 4
      %s27 = int_to_ptr.vmem [resolvable:$true] %s26
      %29 = dma.hbm_to_vmem [thread:$0]  %s1, 256, %s27, [#allocation6]
    $region9: #{tpu_custom_call.1} parent=1 // pred_fallthru
      _
    // Predicated region
    $region10: #{tpu_custom_call.1} parent=1 // pred_check
      _
    $region11: #{tpu_custom_call.1} parent=1 // pred_check_branch
      %31 = sbr.rel (0) target = $region13
    $region12: #{tpu_custom_call.1} parent=1 // pred_region
      %32 = dma.done [#allocation3], 256
    $region13: #{tpu_custom_call.1} parent=1 // pred_fallthru
      _
    // Predicated region
    $region14: #{tpu_custom_call.1} parent=1 // pred_check
      _
    $region15: #{tpu_custom_call.1} parent=1 // pred_check_branch
      %34 = sbr.rel (0) target = $region17
    $region16: #{tpu_custom_call.1} parent=1 // pred_region
      %35 = dma.done [#allocation6], 256
    $region17: #{tpu_custom_call.1} parent=1 // pred_fallthru
      _
    %v36 = vld [vmem:[#allocation2] sm:$0xff]
    %v37 = vld [vmem:[#allocation2 + $0x8] sm:$0xff]
    %v38 = vld [vmem:[#allocation5] sm:$0xff]
    %v39 = vld [vmem:[#allocation5 + $0x8] sm:$0xff]
    %v40 = vmax.f32 %v36, %v38
    %v41 = vmax.f32 %v37, %v39
    %42 = vst [vmem:[#allocation7] sm:$0xff] %v40
    %43 = vst [vmem:[#allocation7 + $0x8] sm:$0xff] %v41
    // Predicated region
    $region18: #{tpu_custom_call.1} parent=1 // pred_check
      _
    $region19: #{tpu_custom_call.1} parent=1 // pred_check_branch
      %45 = sbr.rel (0) target = $region21
    $region20: #{tpu_custom_call.1} parent=1 // pred_region
      %s47 = ssub.s32 256, 256
      %48 = vsyncadd [#allocation4], %s47
      %s50 = sshll.u32 [#allocation7], 4
      %s51 = int_to_ptr.vmem [resolvable:$true] %s50
      %53 = dma.vmem_to_hbm [thread:$0]  %s51, 256, %s2, [#allocation4]
    $region21: #{tpu_custom_call.1} parent=1 // pred_fallthru
      _
    // Predicated region
    $region22: #{tpu_custom_call.1} parent=1 // pred_check
      _
    $region23: #{tpu_custom_call.1} parent=1 // pred_check_branch
      %55 = sbr.rel (0) target = $region25
    $region24: #{tpu_custom_call.1} parent=1 // pred_region
      %56 = dma.done [#allocation4], 256
    $region25: #{tpu_custom_call.1} parent=1 // pred_fallthru
      _
    %57 = vsyncpa [#allocation3], 1
    %58 = vsyncpa [#allocation6], 1
    %59 = vsyncpa [#allocation4], 1

</llo_original>
